<compile_context>
chip_gen: v7x
topology: tpu7x:2x2x1
jax: 0.10.0
libtpu: 0.0.40
codegen_flags: <defaults>
</compile_context>

<pallas_src>
from functools import partial

import jax
import jax.numpy as jnp
from jax.experimental import pallas as pl
from jax.experimental.pallas import tpu as pltpu


_LANE = 128                 # feature dims padded to lane-dense multiples of 128
_TILE_FLOOR_ROWS = 256      # never collapse the MXU M-dim below this for weights
_MIB = 1024 * 1024


def _cdiv(a, b):
    return -(-a // b)


def _round_up(n, m):
    return _cdiv(n, m) * m


def _chip_profile():
    """Returns (physical VMEM bytes per TensorCore, TensorCores per device)."""
    kind = ""
    try:
        kind = jax.devices()[0].device_kind.lower()
    except Exception:
        pass
    vmem_phys = None
    try:
        vmem_phys = int(pltpu.get_tpu_info().vmem_capacity_bytes)
    except Exception:
        vmem_phys = None
    if vmem_phys is None or vmem_phys <= 0:
        if "7" in kind:                          # v7x: 64 MiB / TC
            vmem_phys = 64 * _MIB
        elif "v2" in kind or "v3" in kind:       # ancient parts: stay safe
            vmem_phys = 16 * _MIB
        else:                                    # v4 / v5e / v5p / v6e: 128 MiB
            vmem_phys = 128 * _MIB
    # Dual-TensorCore chips (megacore v4/v5p, v7x) want >=2 grid steps on the
    # "parallel" batch axis; single-TC chips (v5e/v6e) want one maximal tile.
    n_tc = 2 if ("7" in kind or "v4" in kind or "v5p" in kind) else 1
    return vmem_phys, n_tc


def _pad2d(a, rows, cols, dtype):
    r, c = a.shape
    if (r, c) != (rows, cols):
        a = jnp.pad(a, ((0, rows - r), (0, cols - c)))
    return a.astype(dtype)


def _pad_cols(a, cols, dtype):
    r, c = a.shape
    if c != cols:
        a = jnp.pad(a, ((0, 0), (0, cols - c)))
    return a.astype(dtype)


def _vmem_bytes(tile_b, in_p, out_p, xs_bytes, w_bytes, o_bytes, w_buffers=2):
    """Conservative per-step VMEM footprint (double-buffered streams, resident weights)."""
    weights = w_buffers * 2 * in_p * out_p * w_bytes           # W1 + W2
    biases = w_buffers * (in_p + out_p) * 4                    # f32 biases
    x_buf = 2 * tile_b * in_p * xs_bytes                       # x tile, 2 bufs
    o_buf = 2 * tile_b * (in_p + out_p) * o_bytes              # enc + dec tiles, 2 bufs
    interm = tile_b * (in_p + out_p) * 4                       # f32 h / logits headroom
    return weights + biases + x_buf + o_buf + interm


def _autoencoder_kernel(x_ref, w1_ref, b1_ref, w2_ref, b2_ref, enc_ref, dec_ref,
                        *, approx_sigmoid):
    """Fused encoder+decoder for one batch tile.

    Matmuls run on the MXU in the weights' dtype (bf16 fast path) with f32
    accumulation; bias-add / ReLU / sigmoid stay in f32 on the VPU/EUP.
    The decoder consumes the f32 hidden activations (not the rounded
    `encoded` output), matching the PyTorch composition.
    """
    h = jnp.dot(x_ref[...], w1_ref[...], preferred_element_type=jnp.float32)
    h = jnp.maximum(h + b1_ref[...], 0.0)                      # f32 bias + ReLU
    enc_ref[...] = h.astype(enc_ref.dtype)
    d = jnp.dot(h.astype(w2_ref.dtype), w2_ref[...],
                preferred_element_type=jnp.float32)
    t = d + b2_ref[...]
    if approx_sigmoid:
        # sigmoid(t) = 1 / (1 + exp(-t)): exp on the EUP, approximate
        # reciprocal on the near-free EUP rcp slot instead of a full divide.
        dec = pl.reciprocal(1.0 + jnp.exp(-t), approx=True)
    else:
        dec = jax.nn.sigmoid(t)
    dec_ref[...] = dec.astype(dec_ref.dtype)


def autoencoder_forward(x, w1, b1, w2, b2, *, tile_b=None,
                        matmul_dtype=jnp.bfloat16, out_dtype=None,
                        approx_sigmoid=True):
    """AutoEncoder forward pass.

    x : (B, In) activations.
    w1: (In, Out)  encoder weight, pre-transposed vs PyTorch's (Out, In).
    b1: (Out,)
    w2: (Out, In)  decoder weight, pre-transposed.
    b2: (In,)
    Returns (encoded (B, Out), decoded (B, In)) in `out_dtype` (default x.dtype;
    pass jnp.bfloat16 for half-width writeback during inference).
    """
    B, In = x.shape
    Out = w1.shape[1]
    assert w1.shape == (In, Out) and w2.shape == (Out, In)
    assert b1.shape == (Out,) and b2.shape == (In,)

    out_dtype = x.dtype if out_dtype is None else out_dtype
    w_dtype = x.dtype if matmul_dtype is None else matmul_dtype

    vmem_phys, n_tc = _chip_profile()
    vmem_budget = vmem_phys * 3 // 4

    # ---- lane-dense feature dims; dtype bookkeeping ----
    in_p = _round_up(In, _LANE)
    out_p = _round_up(Out, _LANE)
    xs_bytes = jnp.dtype(w_dtype).itemsize      # x is streamed in the matmul dtype
    w_bytes = jnp.dtype(w_dtype).itemsize
    o_bytes = jnp.dtype(out_dtype).itemsize
    sublane = max(8, 32 // min(xs_bytes, o_bytes))   # 8 for f32, 16 for bf16 tiles

    # ---- batch tile: maximal on single-TC chips, split across cores on
    # dual-TC chips, floored at 256 rows so the MXU M-dim stays filled even
    # when resident weights press on the VMEM budget. ----
    max_rows = 1024 if (vmem_phys >= 96 * _MIB and n_tc == 1) else 512
    b_aligned = _round_up(B, sublane)
    if tile_b is None:
        tile_b = _round_up(min(b_aligned, max_rows), sublane)
        floor = min(tile_b, _round_up(_TILE_FLOOR_ROWS, sublane))
        while tile_b > floor and _vmem_bytes(tile_b, in_p, out_p, xs_bytes,
                                             w_bytes, o_bytes) > vmem_budget:
            tile_b = max(floor, _round_up(tile_b // 2, sublane))
        if n_tc > 1 and b_aligned >= n_tc * sublane:
            tile_b = min(tile_b, _round_up(_cdiv(b_aligned, n_tc), sublane))
    else:
        tile_b = _round_up(int(tile_b), sublane)

    grid = (_cdiv(B, tile_b),)

    # ---- operands: pad feature (K/lane) dims to 128 multiples and cast ONCE
    # in the wrapper (bf16 x stream = half the HBM read width). The batch axis
    # is NOT padded: the ragged last tile's OOB rows load garbage and their
    # stores are dropped, which is exact for the valid rows. ----
    x_p = _pad_cols(x, in_p, w_dtype)
    w1_p = _pad2d(w1, in_p, out_p, w_dtype)
    w2_p = _pad2d(w2, out_p, in_p, w_dtype)
    b1_p = _pad_cols(b1.reshape(1, Out), out_p, jnp.float32)
    b2_p = _pad_cols(b2.reshape(1, In), in_p, jnp.float32)

    vmem_est = _vmem_bytes(tile_b, in_p, out_p, xs_bytes, w_bytes, o_bytes)
    vmem_limit = int(min(max(vmem_est * 5 // 4, 16 * _MIB), vmem_phys * 3 // 4))
    if vmem_est > vmem_limit:
        # Resident weights exceed the normal cap: raise the limit toward
        # physical rather than shrinking the M tile below the floor.
        # TODO(synk): stream W1/W2 feature-dim tiles (extra grid axis) when the
        # weights alone exceed physical VMEM.
        vmem_limit = int(min(vmem_est * 9 // 8, vmem_phys * 9 // 10))

    cost = pl.CostEstimate(
        flops=int(2 * 2 * B * in_p * out_p),                 # two GEMMs
        transcendentals=int(B * in_p),                        # sigmoid ~ one exp/elem
        bytes_accessed=int(x_p.size * xs_bytes
                           + (w1_p.size + w2_p.size) * w_bytes
                           + (b1_p.size + b2_p.size) * 4
                           + B * (in_p + out_p) * o_bytes),
    )

    kernel = partial(_autoencoder_kernel, approx_sigmoid=approx_sigmoid)

    def call(weight_mode, x_mode):
        def wspec(shape):
            if weight_mode is None:
                return pl.BlockSpec(shape, lambda i: (0, 0))
            return pl.BlockSpec(shape, lambda i: (0, 0), pipeline_mode=weight_mode)

        x_kwargs = {} if x_mode is None else {"pipeline_mode": x_mode}
        return pl.pallas_call(
            kernel,
            out_shape=(
                jax.ShapeDtypeStruct((B, out_p), out_dtype),
                jax.ShapeDtypeStruct((B, in_p), out_dtype),
            ),
            grid_spec=pltpu.PrefetchScalarGridSpec(
                num_scalar_prefetch=0,
                grid=grid,
                in_specs=[
                    pl.BlockSpec((tile_b, in_p), lambda i: (i, 0), **x_kwargs),
                    wspec((in_p, out_p)),                             # W1 (resident)
                    wspec((1, out_p)),                                # b1
                    wspec((out_p, in_p)),                             # W2 (resident)
                    wspec((1, in_p)),                                 # b2
                ],
                out_specs=[
                    pl.BlockSpec((tile_b, out_p), lambda i: (i, 0)),  # encoded
                    pl.BlockSpec((tile_b, in_p), lambda i: (i, 0)),   # decoded
                ],
            ),
            compiler_params=pltpu.CompilerParams(
                dimension_semantics=("parallel",),
                vmem_limit_bytes=vmem_limit,
            ),
            cost_estimate=cost,
        )(x_p, w1_p, b1_p, w2_p, b2_p)

    # Grid-invariant weights/biases: single-buffer them (Buffered(1)) to halve
    # their resident VMEM footprint; on deep single-TC grids with headroom,
    # triple-buffer the x stream to hide DMA latency. Only pipeline-mode
    # rejections fall back; genuine spec/shape bugs reproduce (and surface) in
    # the unwrapped fallback call.
    use_deep_x = (n_tc == 1 and grid[0] >= 3
                  and vmem_est + tile_b * in_p * xs_bytes <= vmem_budget)
    enc_p = dec_p = None
    if hasattr(pl, "Buffered"):
        try:
            enc_p, dec_p = call(pl.Buffered(1),
                                pl.Buffered(3) if use_deep_x else None)
        except (TypeError, NotImplementedError, ValueError,
                pltpu.LoweringException):
            enc_p = dec_p = None
    if enc_p is None:
        enc_p, dec_p = call(None, None)

    if out_p != Out:
        enc_p = enc_p[:, :Out]
    if in_p != In:
        dec_p = dec_p[:, :In]
    return enc_p, dec_p


def init_params(key, inputsize, outputsize, dtype=jnp.float32):
    """PyTorch nn.Linear default init (U[-1/sqrt(fan_in), 1/sqrt(fan_in)]).
    Weights are stored pre-transposed: (in_features, out_features)."""
    k1, k2, k3, k4 = jax.random.split(key, 4)
    bound1 = 1.0 / jnp.sqrt(inputsize)
    bound2 = 1.0 / jnp.sqrt(outputsize)
    w1 = jax.random.uniform(k1, (inputsize, outputsize), dtype, -bound1, bound1)
    b1 = jax.random.uniform(k2, (outputsize,), dtype, -bound1, bound1)
    w2 = jax.random.uniform(k3, (outputsize, inputsize), dtype, -bound2, bound2)
    b2 = jax.random.uniform(k4, (inputsize,), dtype, -bound2, bound2)
    return w1, b1, w2, b2


if __name__ == "__main__":
    key = jax.random.PRNGKey(0)
    k_x, k_p = jax.random.split(key)

    # Deliberately non-aligned small shapes to exercise the lane-padding and
    # ragged-batch (no batch padding) paths.
    batch, inputsize, outputsize = 12, 200, 96

    x = jax.random.normal(k_x, (batch, inputsize), dtype=jnp.float32)
    w1, b1, w2, b2 = init_params(k_p, inputsize, outputsize)

    # Pure-JAX f32 reference.
    h_ref = jnp.maximum(x @ w1 + b1, 0.0)
    d_ref = jax.nn.sigmoid(h_ref @ w2 + b2)

    # Default fast path: bf16 x/W on the MXU, f32 accumulation, f32 outputs.
    enc, dec = autoencoder_forward(x, w1, b1, w2, b2)
    jax.block_until_ready((enc, dec))
    assert enc.shape == (batch, outputsize) and dec.shape == (batch, inputsize)
    assert jnp.allclose(enc, h_ref, atol=2e-2, rtol=2e-2)
    assert jnp.allclose(dec, d_ref, atol=2e-2, rtol=2e-2)

    # f32-matmul, exact-sigmoid path: tight-tolerance sanity check.
    enc32, dec32 = autoencoder_forward(x, w1, b1, w2, b2,
                                       matmul_dtype=None, approx_sigmoid=False)
    jax.block_until_ready((enc32, dec32))
    assert jnp.allclose(enc32, h_ref, atol=1e-4, rtol=1e-4)
    assert jnp.allclose(dec32, d_ref, atol=1e-4, rtol=1e-4)

    # Optional bf16 outputs (half-width writeback for inference).
    encb, decb = autoencoder_forward(x, w1, b1, w2, b2, out_dtype=jnp.bfloat16)
    jax.block_until_ready((encb, decb))
    assert encb.dtype == jnp.bfloat16 and decb.dtype == jnp.bfloat16
    assert jnp.allclose(decb.astype(jnp.float32), d_ref, atol=4e-2, rtol=4e-2)

    print("KERNEL_OK")
</pallas_src>

<mosaic_0001>
module attributes {stable_mosaic.version = 11 : i64} {
  func.func @_autoencoder_kernel(%arg0: i32, %arg1: memref<16x256xbf16, #tpu.memory_space<vmem>>, %arg2: memref<256x128xbf16, #tpu.memory_space<vmem>>, %arg3: memref<1x128xf32, #tpu.memory_space<vmem>>, %arg4: memref<128x256xbf16, #tpu.memory_space<vmem>>, %arg5: memref<1x256xf32, #tpu.memory_space<vmem>>, %arg6: memref<16x128xf32, #tpu.memory_space<vmem>>, %arg7: memref<16x256xf32, #tpu.memory_space<vmem>>) attributes {dimension_semantics = [#tpu.dimension_semantics<parallel>], iteration_bounds = array<i64: 1>, scalar_prefetch = 0 : i64, scratch_operands = 0 : i64, tpu.core_type = #tpu.core_type<tc>, window_params = [{transform_indices = @transform_0, window_bounds = array<i64: 16, 256>}, {pipeline_mode = #tpu.pipeline_mode<synchronous>, transform_indices = @transform_1, window_bounds = array<i64: 256, 128>}, {pipeline_mode = #tpu.pipeline_mode<synchronous>, transform_indices = @transform_2, window_bounds = array<i64: 1, 128>}, {pipeline_mode = #tpu.pipeline_mode<synchronous>, transform_indices = @transform_3, window_bounds = array<i64: 128, 256>}, {pipeline_mode = #tpu.pipeline_mode<synchronous>, transform_indices = @transform_4, window_bounds = array<i64: 1, 256>}, {transform_indices = @transform_5, window_bounds = array<i64: 16, 128>}, {transform_indices = @transform_6, window_bounds = array<i64: 16, 256>}]} {
    %c0 = arith.constant 0 : index
    %c0_0 = arith.constant 0 : index
    %0 = vector.load %arg1[%c0, %c0_0] : memref<16x256xbf16, #tpu.memory_space<vmem>>, vector<16x256xbf16>
    %c0_1 = arith.constant 0 : index
    %c0_2 = arith.constant 0 : index
    %1 = vector.load %arg2[%c0_1, %c0_2] : memref<256x128xbf16, #tpu.memory_space<vmem>>, vector<256x128xbf16>
    %cst = arith.constant dense<0.000000e+00> : vector<16x128xf32>
    %2 = tpu.matmul %0, %1, %cst {dimension_numbers = #tpu.dot_dimension_numbers<[1], [0], [0], [1], [0, 0, 1, 1], [], []>} : vector<16x256xbf16>, vector<256x128xbf16>, vector<16x128xf32> -> vector<16x128xf32>
    %c0_3 = arith.constant 0 : index
    %c0_4 = arith.constant 0 : index
    %3 = vector.load %arg3[%c0_3, %c0_4] : memref<1x128xf32, #tpu.memory_space<vmem>>, vector<1x128xf32>
    %4 = vector.broadcast %3 : vector<1x128xf32> to vector<16x128xf32>
    %5 = arith.addf %2, %4 : vector<16x128xf32>
    %cst_5 = arith.constant 0.000000e+00 : f32
    %6 = vector.broadcast %cst_5 : f32 to vector<16x128xf32>
    %7 = arith.maximumf %5, %6 : vector<16x128xf32>
    %c0_6 = arith.constant 0 : index
    %c0_7 = arith.constant 0 : index
    %8 = vector.load %arg6[%c0_6, %c0_7] : memref<16x128xf32, #tpu.memory_space<vmem>>, vector<16x128xf32>
    tpu.vector_store %arg6[%c0_6, %c0_7], %7 {strides = array<i32>} : memref<16x128xf32, #tpu.memory_space<vmem>>, vector<16x128xf32>,
    %9 = arith.truncf %7 : vector<16x128xf32> to vector<16x128xbf16>
    %c0_8 = arith.constant 0 : index
    %c0_9 = arith.constant 0 : index
    %10 = vector.load %arg4[%c0_8, %c0_9] : memref<128x256xbf16, #tpu.memory_space<vmem>>, vector<128x256xbf16>
    %cst_10 = arith.constant dense<0.000000e+00> : vector<16x256xf32>
    %11 = tpu.matmul %9, %10, %cst_10 {dimension_numbers = #tpu.dot_dimension_numbers<[1], [0], [0], [1], [0, 0, 1, 1], [], []>} : vector<16x128xbf16>, vector<128x256xbf16>, vector<16x256xf32> -> vector<16x256xf32>
    %c0_11 = arith.constant 0 : index
    %c0_12 = arith.constant 0 : index
    %12 = vector.load %arg5[%c0_11, %c0_12] : memref<1x256xf32, #tpu.memory_space<vmem>>, vector<1x256xf32>
    %13 = vector.broadcast %12 : vector<1x256xf32> to vector<16x256xf32>
    %14 = arith.addf %11, %13 : vector<16x256xf32>
    %cst_13 = arith.constant 0.000000e+00 : f32
    %15 = vector.broadcast %cst_13 : f32 to vector<16x256xf32>
    %16 = arith.subf %15, %14 : vector<16x256xf32>
    %17 = math.exp %16 : vector<16x256xf32>
    %cst_14 = arith.constant 1.000000e+00 : f32
    %18 = vector.broadcast %cst_14 : f32 to vector<16x256xf32>
    %19 = arith.addf %18, %17 : vector<16x256xf32>
    %20 = tpu.reciprocal %19 {approx = true} : vector<16x256xf32> -> vector<16x256xf32>
    %c0_15 = arith.constant 0 : index
    %c0_16 = arith.constant 0 : index
    %21 = vector.load %arg7[%c0_15, %c0_16] : memref<16x256xf32, #tpu.memory_space<vmem>>, vector<16x256xf32>
    tpu.vector_store %arg7[%c0_15, %c0_16], %20 {strides = array<i32>} : memref<16x256xf32, #tpu.memory_space<vmem>>, vector<16x256xf32>,
    return
  }
  func.func @transform_0(%arg0: i32) -> (i32, i32) {
    %c0_i32 = arith.constant 0 : i32
    %c0_i32_0 = arith.constant 0 : i32
    return %arg0, %c0_i32 : i32, i32
  }
  func.func @transform_1(%arg0: i32) -> (i32, i32) {
    %c0_i32 = arith.constant 0 : i32
    %c0_i32_0 = arith.constant 0 : i32
    %c0_i32_1 = arith.constant 0 : i32
    return %c0_i32, %c0_i32_0 : i32, i32
  }
  func.func @transform_2(%arg0: i32) -> (i32, i32) {
    %c0_i32 = arith.constant 0 : i32
    %c0_i32_0 = arith.constant 0 : i32
    %c0_i32_1 = arith.constant 0 : i32
    return %c0_i32, %c0_i32_0 : i32, i32
  }
  func.func @transform_3(%arg0: i32) -> (i32, i32) {
    %c0_i32 = arith.constant 0 : i32
    %c0_i32_0 = arith.constant 0 : i32
    %c0_i32_1 = arith.constant 0 : i32
    return %c0_i32, %c0_i32_0 : i32, i32
  }
  func.func @transform_4(%arg0: i32) -> (i32, i32) {
    %c0_i32 = arith.constant 0 : i32
    %c0_i32_0 = arith.constant 0 : i32
    %c0_i32_1 = arith.constant 0 : i32
    return %c0_i32, %c0_i32_0 : i32, i32
  }
  func.func @transform_5(%arg0: i32) -> (i32, i32) {
    %c0_i32 = arith.constant 0 : i32
    %c0_i32_0 = arith.constant 0 : i32
    return %arg0, %c0_i32 : i32, i32
  }
  func.func @transform_6(%arg0: i32) -> (i32, i32) {
    %c0_i32 = arith.constant 0 : i32
    %c0_i32_0 = arith.constant 0 : i32
    return %arg0, %c0_i32 : i32, i32
  }
}

</mosaic_0001>

<llo_original>
// kernel: tpu_custom_call.1
$region0: #{tpu_custom_call.1}
  #allocation0 [shape = 'u32[]', space=smem, size = 0x4, offset = 0x4, fixed_abs, tag = 'smem constant byte address 0x4 - core index']
  #allocation1 [shape = 'u32[144,128]{1,0:T(1,128)}', space=vmem, size = 0x12000, scoped, tag = 'internal scratch']
  %s0 = inlined_call_operand.hbm [shape: bf16[12,256], index: 0, kind: input, shape index: {}]
  %s1 = inlined_call_operand.hbm [shape: bf16[256,128], index: 1, kind: input, shape index: {}]
  %s2 = inlined_call_operand.vmem [shape: f32[1,128], index: 2, kind: input, shape index: {}]
  %s3 = inlined_call_operand.hbm [shape: bf16[128,256], index: 3, kind: input, shape index: {}]
  %s4 = inlined_call_operand.vmem [shape: f32[1,256], index: 4, kind: input, shape index: {}]
  %s5 = inlined_call_operand.hbm [shape: f32[12,128], index: 5, kind: output, shape index: {0}]
  %s6 = inlined_call_operand.hbm [shape: f32[12,256], index: 6, kind: output, shape index: {1}]
  %7 = xla_tuple %s5, %s6
  %s8 = sld [smem:[#allocation0]]
  $region50: #{tpu_custom_call.1} parent=0
    _
  %s10 = ssub.s32 1, %s8
  %s11 = scalar_select 0, %s10, %s8
  $region1: #{tpu_custom_call.1} parent=0
    #allocation2 [shape = 'u8[8192]{0}', space=vmem, size = 0x2000, scoped, tag = 'input window, operand 0, single buffered']
    #allocation3 [shape = 's32[1]{0}', space=sflag, size = 0x4, scoped, tag = 'scoped memory for tpu_custom_call.1']
    #allocation4 [shape = 's32[1]{0}', space=sflag, size = 0x4, scoped, tag = 'scoped memory for tpu_custom_call.1']
    #allocation5 [shape = 'u8[65536]{0}', space=vmem, size = 0x10000, scoped, tag = 'input window, operand 1, single buffered']
    #allocation6 [shape = 's32[1]{0}', space=sflag, size = 0x4, scoped, tag = 'scoped memory for tpu_custom_call.1']
    #allocation7 [shape = 'u8[65536]{0}', space=vmem, size = 0x10000, scoped, tag = 'input window, operand 3, single buffered']
    #allocation8 [shape = 'u8[8192]{0}', space=vmem, size = 0x2000, scoped, tag = 'output window, operand 0, single buffered']
    #allocation9 [shape = 'u8[16384]{0}', space=vmem, size = 0x4000, scoped, tag = 'output window, operand 1, single buffered']
    #allocation10 [shape = 's32[1]{0}', space=sflag, size = 0x4, scoped, tag = 'scoped memory for tpu_custom_call.1']
    %12 = vsyncpa [#allocation3], 0
    %13 = vsyncpa [#allocation6], 0
    %14 = vsyncpa [#allocation4], 0
    %15 = vsyncpa [#allocation10], 0
    // Predicated region
    $region2: #{tpu_custom_call.1} parent=1 // pred_check
      _
    $region3: #{tpu_custom_call.1} parent=1 // pred_check_branch
      %17 = sbr.rel (0) target = $region5
    $region4: #{tpu_custom_call.1} parent=1 // pred_region
      %s19 = ssub.s32 256, 256
      %20 = vsyncadd [#allocation3], %s19
      %s21 = sshll.u32 [#allocation2], 4
      %s22 = int_to_ptr.vmem [resolvable:$true] %s21
      %27 = dma.hbm_to_vmem [thread:$0]  %s0, 256, %s22, [#allocation3], 128, 128, 8
    $region5: #{tpu_custom_call.1} parent=1 // pred_fallthru
      _
    // Predicated region
    $region6: #{tpu_custom_call.1} parent=1 // pred_check
      _
    $region7: #{tpu_custom_call.1} parent=1 // pred_check_branch
      %29 = sbr.rel (0) target = $region9
    $region8: #{tpu_custom_call.1} parent=1 // pred_region
      %s31 = ssub.s32 2048, 2048
      %32 = vsyncadd [#allocation6], %s31
      %s33 = sshll.u32 [#allocation5], 4
      %s34 = int_to_ptr.vmem [resolvable:$true] %s33
      %39 = dma.hbm_to_vmem [thread:$0]  %s1, 2048, %s34, [#allocation6], 64, 64, 4
    $region9: #{tpu_custom_call.1} parent=1 // pred_fallthru
      _
    // Predicated region
    $region10: #{tpu_custom_call.1} parent=1 // pred_check
      _
    $region11: #{tpu_custom_call.1} parent=1 // pred_check_branch
      %41 = sbr.rel (0) target = $region13
    $region12: #{tpu_custom_call.1} parent=1 // pred_region
      _
    $region13: #{tpu_custom_call.1} parent=1 // pred_fallthru
      _
    // Predicated region
    $region14: #{tpu_custom_call.1} parent=1 // pred_check
      _
    $region15: #{tpu_custom_call.1} parent=1 // pred_check_branch
      %43 = sbr.rel (0) target = $region17
    $region16: #{tpu_custom_call.1} parent=1 // pred_region
      %s45 = ssub.s32 2048, 2048
      %46 = vsyncadd [#allocation6], %s45
      %s47 = sshll.u32 [#allocation7], 4
      %s48 = int_to_ptr.vmem [resolvable:$true] %s47
      %53 = dma.hbm_to_vmem [thread:$0]  %s3, 2048, %s48, [#allocation6], 128, 128, 8
    $region17: #{tpu_custom_call.1} parent=1 // pred_fallthru
      _
    // Predicated region
    $region18: #{tpu_custom_call.1} parent=1 // pred_check
      _
    $region19: #{tpu_custom_call.1} parent=1 // pred_check_branch
      %55 = sbr.rel (0) target = $region21
    $region20: #{tpu_custom_call.1} parent=1 // pred_region
      _
    $region21: #{tpu_custom_call.1} parent=1 // pred_fallthru
      _
    // Predicated region
    $region22: #{tpu_custom_call.1} parent=1 // pred_check
      _
    $region23: #{tpu_custom_call.1} parent=1 // pred_check_branch
      %57 = sbr.rel (0) target = $region25
    $region24: #{tpu_custom_call.1} parent=1 // pred_region
      %58 = dma.done [#allocation3], 256
    $region25: #{tpu_custom_call.1} parent=1 // pred_fallthru
      _
    // Predicated region
    $region26: #{tpu_custom_call.1} parent=1 // pred_check
      _
    $region27: #{tpu_custom_call.1} parent=1 // pred_check_branch
      %60 = sbr.rel (0) target = $region29
    $region28: #{tpu_custom_call.1} parent=1 // pred_region
      %61 = dma.done [#allocation6], 2048
    $region29: #{tpu_custom_call.1} parent=1 // pred_fallthru
      _
    // Predicated region
    $region30: #{tpu_custom_call.1} parent=1 // pred_check
      _
    $region31: #{tpu_custom_call.1} parent=1 // pred_check_branch
      %63 = sbr.rel (0) target = $region33
    $region32: #{tpu_custom_call.1} parent=1 // pred_region
      %64 = dma.done [#allocation6], 2048
    $region33: #{tpu_custom_call.1} parent=1 // pred_fallthru
      _
    %v66 = vld [vmem:[#allocation2] sm:$0xff]
    %v67 = vld [vmem:[#allocation2 + $0x8] sm:$0xff]
    %v68 = vld [vmem:[#allocation5] sm:$0xf]
    %v69 = vld [vmem:[#allocation5 + $0x4] sm:$0xf]
    %v70 = vld [vmem:[#allocation5 + $0x8] sm:$0xf]
    %v71 = vld [vmem:[#allocation5 + $0xc] sm:$0xf]
    %v72 = vld [vmem:[#allocation5 + $0x10] sm:$0xf]
    %v73 = vld [vmem:[#allocation5 + $0x14] sm:$0xf]
    %v74 = vld [vmem:[#allocation5 + $0x18] sm:$0xf]
    %v75 = vld [vmem:[#allocation5 + $0x1c] sm:$0xf]
    %v76 = vld [vmem:[#allocation5 + $0x20] sm:$0xf]
    %v77 = vld [vmem:[#allocation5 + $0x24] sm:$0xf]
    %v78 = vld [vmem:[#allocation5 + $0x28] sm:$0xf]
    %v79 = vld [vmem:[#allocation5 + $0x2c] sm:$0xf]
    %v80 = vld [vmem:[#allocation5 + $0x30] sm:$0xf]
    %v81 = vld [vmem:[#allocation5 + $0x34] sm:$0xf]
    %v82 = vld [vmem:[#allocation5 + $0x38] sm:$0xf]
    %v83 = vld [vmem:[#allocation5 + $0x3c] sm:$0xf]
    %v84 = vld [vmem:[#allocation5 + $0x40] sm:$0xf]
    %v85 = vld [vmem:[#allocation5 + $0x44] sm:$0xf]
    %v86 = vld [vmem:[#allocation5 + $0x48] sm:$0xf]
    %v87 = vld [vmem:[#allocation5 + $0x4c] sm:$0xf]
    %v88 = vld [vmem:[#allocation5 + $0x50] sm:$0xf]
    %v89 = vld [vmem:[#allocation5 + $0x54] sm:$0xf]
    %v90 = vld [vmem:[#allocation5 + $0x58] sm:$0xf]
    %v91 = vld [vmem:[#allocation5 + $0x5c] sm:$0xf]
    %v92 = vld [vmem:[#allocation5 + $0x60] sm:$0xf]
    %v93 = vld [vmem:[#allocation5 + $0x64] sm:$0xf]
    %v94 = vld [vmem:[#allocation5 + $0x68] sm:$0xf]
    %v95 = vld [vmem:[#allocation5 + $0x6c] sm:$0xf]
    %v96 = vld [vmem:[#allocation5 + $0x70] sm:$0xf]
    %v97 = vld [vmem:[#allocation5 + $0x74] sm:$0xf]
    %v98 = vld [vmem:[#allocation5 + $0x78] sm:$0xf]
    %v99 = vld [vmem:[#allocation5 + $0x7c] sm:$0xf]
    %v100 = vld [vmem:[%s2] sm:$0x1]
    %v102 = vlaneseq
    %v103 = vshrl.u32 %v102, 7
    %v104 = vsub.s32 0, %v103
    %v105 = vrot.slane %v100, %v104
    %v109 = vunpack.c.l.b16 %v66
    %v110 = vunpack.c.h.b16 %v66
    %v111 = vunpack.c.l.b16 %v67
    %v112 = vunpack.c.h.b16 %v67
    %v113 = vpack.c.b16 %v111, %v109
    %v114 = vpack.c.b16 %v112, %v110
    %v149 = vunpack.c.l.b16 %v68
    %v150 = vunpack.c.l.b16 %v69
    %v151 = vunpack.c.l.b16 %v70
    %v152 = vunpack.c.l.b16 %v71
    %v153 = vunpack.c.l.b16 %v72
    %v154 = vunpack.c.l.b16 %v73
    %v155 = vunpack.c.l.b16 %v74
    %v156 = vunpack.c.l.b16 %v75
    %v157 = vunpack.c.l.b16 %v76
    %v158 = vunpack.c.l.b16 %v77
    %v159 = vunpack.c.l.b16 %v78
    %v160 = vunpack.c.l.b16 %v79
    %v161 = vunpack.c.l.b16 %v80
    %v162 = vunpack.c.l.b16 %v81
    %v163 = vunpack.c.l.b16 %v82
    %v164 = vunpack.c.l.b16 %v83
    %v165 = vunpack.c.l.b16 %v84
    %v166 = vunpack.c.l.b16 %v85
    %v167 = vunpack.c.l.b16 %v86
    %v168 = vunpack.c.l.b16 %v87
    %v169 = vunpack.c.l.b16 %v88
    %v170 = vunpack.c.l.b16 %v89
    %v171 = vunpack.c.l.b16 %v90
    %v172 = vunpack.c.l.b16 %v91
    %v173 = vunpack.c.l.b16 %v92
    %v174 = vunpack.c.l.b16 %v93
    %v175 = vunpack.c.l.b16 %v94
    %v176 = vunpack.c.l.b16 %v95
    %v177 = vunpack.c.l.b16 %v96
    %v178 = vunpack.c.l.b16 %v97
    %v179 = vunpack.c.l.b16 %v98
    %v180 = vunpack.c.l.b16 %v99
    %v181 = vpack.c.b16 %v150, %v149
    %v182 = vpack.c.b16 %v152, %v151
    %v183 = vpack.c.b16 %v154, %v153
    %v184 = vpack.c.b16 %v156, %v155
    %v185 = vpack.c.b16 %v158, %v157
    %v186 = vpack.c.b16 %v160, %v159
    %v187 = vpack.c.b16 %v162, %v161
    %v188 = vpack.c.b16 %v164, %v163
    %v189 = vpack.c.b16 %v166, %v165
    %v190 = vpack.c.b16 %v168, %v167
    %v191 = vpack.c.b16 %v170, %v169
    %v192 = vpack.c.b16 %v172, %v171
    %v193 = vpack.c.b16 %v174, %v173
    %v194 = vpack.c.b16 %v176, %v175
    %v195 = vpack.c.b16 %v178, %v177
    %v196 = vpack.c.b16 %v180, %v179
    %213 = vmatprep.subr.bf16.mxu0 0
    %214 = vmatpush1.bf16.msra.mxu0 %v181
    %215 = vmatprep.subr.bf16.mxu0 0
    %216 = vmatpush1.bf16.msra.mxu0 %v182
    %217 = vmatprep.subr.bf16.mxu0 0
    %218 = vmatpush1.bf16.msra.mxu0 %v183
    %219 = vmatprep.subr.bf16.mxu0 0
    %220 = vmatpush1.bf16.msra.mxu0 %v184
    %221 = vmatprep.subr.bf16.mxu0 0
    %222 = vmatpush1.bf16.msra.mxu0 %v185
    %223 = vmatprep.subr.bf16.mxu0 0
    %224 = vmatpush1.bf16.msra.mxu0 %v186
    %225 = vmatprep.subr.bf16.mxu0 0
    %226 = vmatpush1.bf16.msra.mxu0 %v187
    %227 = vmatprep.subr.bf16.mxu0 0
    %228 = vmatpush1.bf16.msra.mxu0 %v188
    %229 = vmatprep.subr.bf16.mxu0 0
    %230 = vmatpush1.bf16.msra.mxu0 %v189
    %231 = vmatprep.subr.bf16.mxu0 0
    %232 = vmatpush1.bf16.msra.mxu0 %v190
    %233 = vmatprep.subr.bf16.mxu0 0
    %234 = vmatpush1.bf16.msra.mxu0 %v191
    %235 = vmatprep.subr.bf16.mxu0 0
    %236 = vmatpush1.bf16.msra.mxu0 %v192
    %237 = vmatprep.subr.bf16.mxu0 0
    %238 = vmatpush1.bf16.msra.mxu0 %v193
    %239 = vmatprep.subr.bf16.mxu0 0
    %240 = vmatpush1.bf16.msra.mxu0 %v194
    %241 = vmatprep.subr.bf16.mxu0 0
    %242 = vmatpush1.bf16.msra.mxu0 %v195
    %243 = vmatprep.subr.bf16.mxu0 0
    %244 = vmatpush1.bf16.msra.mxu0 %v196
    %245 = vmatprep.mubr.bf16.mxu0 %v114
    %246 = vmatmul.mubr.bf16.gmra.mrb[0].mxu0 %v113
    %v247 = vpop.f32.mrb[0].mxu0
    %v248 = vadd.f32 %v105, %v247
    %v249 = vpop.f32.mrb[0].mxu0
    %v250 = vpop.f32.mrb[0].mxu0
    %v251 = vadd.f32 %v105, %v250
    %v252 = vpop.f32.mrb[0].mxu0
    %253 = vdwg.mxu0
    %v254 = vmax.f32 %v248, 0.0
    %v255 = vmax.f32 %v251, 0.0
    %256 = vst [vmem:[#allocation8] sm:$0xff] %v254
    %257 = vst [vmem:[#allocation8 + $0x8] sm:$0xff] %v255
    %v258 = vpack.c.bf16 %v255, %v254
    %v259 = vld [vmem:[#allocation7] sm:$0xff]
    %v260 = vld [vmem:[#allocation7 + $0x8] sm:$0xff]
    %v261 = vld [vmem:[#allocation7 + $0x10] sm:$0xff]
    %v262 = vld [vmem:[#allocation7 + $0x18] sm:$0xff]
    %v263 = vld [vmem:[#allocation7 + $0x20] sm:$0xff]
    %v264 = vld [vmem:[#allocation7 + $0x28] sm:$0xff]
    %v265 = vld [vmem:[#allocation7 + $0x30] sm:$0xff]
    %v266 = vld [vmem:[#allocation7 + $0x38] sm:$0xff]
    %v267 = vld [vmem:[#allocation7 + $0x40] sm:$0xff]
    %v268 = vld [vmem:[#allocation7 + $0x48] sm:$0xff]
    %v269 = vld [vmem:[#allocation7 + $0x50] sm:$0xff]
    %v270 = vld [vmem:[#allocation7 + $0x58] sm:$0xff]
    %v271 = vld [vmem:[#allocation7 + $0x60] sm:$0xff]
    %v272 = vld [vmem:[#allocation7 + $0x68] sm:$0xff]
    %v273 = vld [vmem:[#allocation7 + $0x70] sm:$0xff]
    %v274 = vld [vmem:[#allocation7 + $0x78] sm:$0xff]
    %v275 = vld [vmem:[%s4] sm:$0x3]
    %v277 = vlaneseq
    %v278 = vshrl.u32 %v277, 7
    %v279 = vsub.s32 0, %v278
    %v280 = vrot.slane %v275, %v279
    %v281 = vlaneseq
    %v282 = vshrl.u32 %v281, 7
    %v283 = vsub.s32 1, %v282
    %v284 = vrot.slane %v275, %v283
    %v303 = vunpack.c.l.b16 %v259
    %v304 = vunpack.c.h.b16 %v259
    %v305 = vunpack.c.l.b16 %v260
    %v306 = vunpack.c.h.b16 %v260
    %v307 = vunpack.c.l.b16 %v261
    %v308 = vunpack.c.h.b16 %v261
    %v309 = vunpack.c.l.b16 %v262
    %v310 = vunpack.c.h.b16 %v262
    %v311 = vunpack.c.l.b16 %v263
    %v312 = vunpack.c.h.b16 %v263
    %v313 = vunpack.c.l.b16 %v264
    %v314 = vunpack.c.h.b16 %v264
    %v315 = vunpack.c.l.b16 %v265
    %v316 = vunpack.c.h.b16 %v265
    %v317 = vunpack.c.l.b16 %v266
    %v318 = vunpack.c.h.b16 %v266
    %v319 = vunpack.c.l.b16 %v267
    %v320 = vunpack.c.h.b16 %v267
    %v321 = vunpack.c.l.b16 %v268
    %v322 = vunpack.c.h.b16 %v268
    %v323 = vunpack.c.l.b16 %v269
    %v324 = vunpack.c.h.b16 %v269
    %v325 = vunpack.c.l.b16 %v270
    %v326 = vunpack.c.h.b16 %v270
    %v327 = vunpack.c.l.b16 %v271
    %v328 = vunpack.c.h.b16 %v271
    %v329 = vunpack.c.l.b16 %v272
    %v330 = vunpack.c.h.b16 %v272
    %v331 = vunpack.c.l.b16 %v273
    %v332 = vunpack.c.h.b16 %v273
    %v333 = vunpack.c.l.b16 %v274
    %v334 = vunpack.c.h.b16 %v274
    %v335 = vpack.c.b16 %v305, %v303
    %v336 = vpack.c.b16 %v306, %v304
    %v337 = vpack.c.b16 %v309, %v307
    %v338 = vpack.c.b16 %v310, %v308
    %v339 = vpack.c.b16 %v313, %v311
    %v340 = vpack.c.b16 %v314, %v312
    %v341 = vpack.c.b16 %v317, %v315
    %v342 = vpack.c.b16 %v318, %v316
    %v343 = vpack.c.b16 %v321, %v319
    %v344 = vpack.c.b16 %v322, %v320
    %v345 = vpack.c.b16 %v325, %v323
    %v346 = vpack.c.b16 %v326, %v324
    %v347 = vpack.c.b16 %v329, %v327
    %v348 = vpack.c.b16 %v330, %v328
    %v349 = vpack.c.b16 %v333, %v331
    %v350 = vpack.c.b16 %v334, %v332
    %367 = vmatprep.subr.bf16.mxu0 %v336
    %368 = vmatpush1.bf16.msra.mxu0 %v335
    %369 = vmatprep.subr.bf16.mxu0 %v338
    %370 = vmatpush1.bf16.msra.mxu0 %v337
    %371 = vmatprep.subr.bf16.mxu0 %v340
    %372 = vmatpush1.bf16.msra.mxu0 %v339
    %373 = vmatprep.subr.bf16.mxu0 %v342
    %374 = vmatpush1.bf16.msra.mxu0 %v341
    %375 = vmatprep.subr.bf16.mxu0 %v344
    %376 = vmatpush1.bf16.msra.mxu0 %v343
    %377 = vmatprep.subr.bf16.mxu0 %v346
    %378 = vmatpush1.bf16.msra.mxu0 %v345
    %379 = vmatprep.subr.bf16.mxu0 %v348
    %380 = vmatpush1.bf16.msra.mxu0 %v347
    %381 = vmatprep.subr.bf16.mxu0 %v350
    %382 = vmatpush1.bf16.msra.mxu0 %v349
    %383 = vmatprep.subr.bf16.mxu0 0
    %384 = vmatpush1.bf16.msra.mxu0 0
    %385 = vmatprep.subr.bf16.mxu0 0
    %386 = vmatpush1.bf16.msra.mxu0 0
    %387 = vmatprep.subr.bf16.mxu0 0
    %388 = vmatpush1.bf16.msra.mxu0 0
    %389 = vmatprep.subr.bf16.mxu0 0
    %390 = vmatpush1.bf16.msra.mxu0 0
    %391 = vmatprep.subr.bf16.mxu0 0
    %392 = vmatpush1.bf16.msra.mxu0 0
    %393 = vmatprep.subr.bf16.mxu0 0
    %394 = vmatpush1.bf16.msra.mxu0 0
    %395 = vmatprep.subr.bf16.mxu0 0
    %396 = vmatpush1.bf16.msra.mxu0 0
    %397 = vmatprep.subr.bf16.mxu0 0
    %398 = vmatpush1.bf16.msra.mxu0 0
    %399 = vmatprep.mubr.bf16.mxu0 0
    %400 = vmatmul.mubr.bf16.gmra.mrb[0].mxu0 %v258
    %v401 = vpop.f32.mrb[0].mxu0
    %v402 = vadd.f32 %v280, %v401
    %v403 = vpop.f32.mrb[0].mxu0
    %v404 = vadd.f32 %v284, %v403
    %v405 = vpop.f32.mrb[0].mxu0
    %v406 = vadd.f32 %v280, %v405
    %v407 = vpop.f32.mrb[0].mxu0
    %v408 = vadd.f32 %v284, %v407
    %409 = vdwg.mxu0
    %v410 = vsub.f32 0.0, %v402
    %v411 = vsub.f32 0.0, %v404
    %v412 = vsub.f32 0.0, %v406
    %v413 = vsub.f32 0.0, %v408
    %v414 = vmul.f32 %v410, 1.442695
    %v415 = vpow.pop %v414
    %v416 = vmul.f32 %v411, 1.442695
    %v417 = vpow.pop %v416
    %v418 = vmul.f32 %v412, 1.442695
    %v419 = vpow.pop %v418
    %v420 = vmul.f32 %v413, 1.442695
    %v421 = vpow.pop %v420
    %v422 = vadd.f32 %v415, 1.0
    %v423 = vadd.f32 %v417, 1.0
    %v424 = vadd.f32 %v419, 1.0
    %v425 = vadd.f32 %v421, 1.0
    %v426 = vrcp.pop %v422
    %v427 = vrcp.pop %v423
    %v428 = vrcp.pop %v424
    %v429 = vrcp.pop %v425
    %430 = vst [vmem:[#allocation9] sm:$0xff] %v426
    %431 = vst [vmem:[#allocation9 + $0x8] sm:$0xff] %v427
    %432 = vst [vmem:[#allocation9 + $0x10] sm:$0xff] %v428
    %433 = vst [vmem:[#allocation9 + $0x18] sm:$0xff] %v429
    // Predicated region
    $region34: #{tpu_custom_call.1} parent=1 // pred_check
      _
    $region35: #{tpu_custom_call.1} parent=1 // pred_check_branch
      %435 = sbr.rel (0) target = $region37
    $region36: #{tpu_custom_call.1} parent=1 // pred_region
      %s437 = ssub.s32 256, 256
      %438 = vsyncadd [#allocation4], %s437
      %s439 = sshll.u32 [#allocation8], 4
      %s440 = int_to_ptr.vmem [resolvable:$true] %s439
      %445 = dma.vmem_to_hbm [thread:$0]  %s440, 256, %s5, [#allocation4], 128, 128, 8
    $region37: #{tpu_custom_call.1} parent=1 // pred_fallthru
      _
    // Predicated region
    $region38: #{tpu_custom_call.1} parent=1 // pred_check
      _
    $region39: #{tpu_custom_call.1} parent=1 // pred_check_branch
      %447 = sbr.rel (0) target = $region41
    $region40: #{tpu_custom_call.1} parent=1 // pred_region
      %s449 = ssub.s32 512, 512
      %450 = vsyncadd [#allocation10], %s449
      %s451 = sshll.u32 [#allocation9], 4
      %s452 = int_to_ptr.vmem [resolvable:$true] %s451
      %457 = dma.vmem_to_hbm [thread:$0]  %s452, 512, %s6, [#allocation10], 256, 256, 16
    $region41: #{tpu_custom_call.1} parent=1 // pred_fallthru
      _
    // Predicated region
    $region42: #{tpu_custom_call.1} parent=1 // pred_check
      _
    $region43: #{tpu_custom_call.1} parent=1 // pred_check_branch
      %459 = sbr.rel (0) target = $region45
    $region44: #{tpu_custom_call.1} parent=1 // pred_region
      %460 = dma.done [#allocation4], 256
    $region45: #{tpu_custom_call.1} parent=1 // pred_fallthru
      _
    // Predicated region
    $region46: #{tpu_custom_call.1} parent=1 // pred_check
      _
    $region47: #{tpu_custom_call.1} parent=1 // pred_check_branch
      %462 = sbr.rel (0) target = $region49
    $region48: #{tpu_custom_call.1} parent=1 // pred_region
      %463 = dma.done [#allocation10], 512
    $region49: #{tpu_custom_call.1} parent=1 // pred_fallthru
      _
    %464 = vsyncpa [#allocation3], 1
    %465 = vsyncpa [#allocation6], 1
    %466 = vsyncpa [#allocation4], 1
    %467 = vsyncpa [#allocation10], 1

</llo_original>
